<compile_context>
chip_gen: v7x
topology: tpu7x:2x2x1
jax: 0.10.0
libtpu: 0.0.40
codegen_flags: <defaults>
</compile_context>

<pallas_src>
import jax
import jax.numpy as jnp
from jax import lax
from jax.experimental import pallas as pl
from jax.experimental.pallas import tpu as pltpu


HIDDEN = 50
_LANE = 128
_VMEM_TARGET = 40 << 20   # tile-selection budget: safe under v7x's 64 MiB VMEM
_MIN_STEPS_TARGET = 8     # aim for >= 8 grid steps on large batches (v7x megacore)


def _round_up(x, m):
    return ((x + m - 1) // m) * m


def _cdiv(a, b):
    return -(-a // b)


def _per_row_vmem_bytes(D, hidden):
    """Approx. VMEM bytes per batch row at f32, including (8,128) lane padding."""
    d_pad = _round_up(max(D, 1), _LANE)
    h_pad = _round_up(max(hidden, 1), _LANE)
    return 4 * (2 * d_pad      # x double buffer (lane-padded in VMEM)
                + d_pad        # staged x value for the matmul
                + 2 * h_pad    # h1 / h2 activation intermediates
                + 2)           # lane-dense out (double-buffered)


def _choose_tile(B, D, hidden, w_bytes):
    per_row = _per_row_vmem_bytes(D, hidden)
    budget = _VMEM_TARGET - 2 * w_bytes - (4 << 20)
    cap = max(_LANE, (max(budget, 0) // per_row) // _LANE * _LANE)
    # Keep >= _MIN_STEPS_TARGET grid steps when the batch is large enough
    # (shards across both v7x TensorCores and keeps the pipeline busy).
    cap = min(cap, max(_LANE, _round_up(_cdiv(B, _MIN_STEPS_TARGET), _LANE)))
    num_steps = _cdiv(B, cap)
    # Minimize batch padding for this step count (multiple of 128 => lane-dense out).
    tile_b = _round_up(_cdiv(B, num_steps), _LANE)
    return tile_b, num_steps


def _discriminator_kernel(x_ref, w1_ref, b1_ref, w2_ref, b2_ref, w3t_ref, b3_ref,
                          out_ref):
    x = x_ref[...]                                                  # (tile_b, D) f32

    # Layer 1: Linear(D, 50) + Tanh   (f32 matmul, f32 accumulation)
    h1 = jnp.tanh(jnp.dot(x, w1_ref[...],
                          preferred_element_type=jnp.float32) + b1_ref[...])

    # Layer 2: Linear(50, 50) + Tanh
    h2 = jnp.tanh(jnp.dot(h1, w2_ref[...],
                          preferred_element_type=jnp.float32) + b2_ref[...])

    # Layer 3: Linear(50, 1) + Sigmoid, computed transposed:
    # (1, hidden) x (tile_b, hidden) contracted on hidden -> (1, tile_b), which is
    # already lane-dense, so the store below is a full-lane unmasked vst.
    logits_t = lax.dot_general(
        w3t_ref[...], h2, (((1,), (1,)), ((), ())),
        preferred_element_type=jnp.float32) + b3_ref[...]

    # Sigmoid via tanh: single EUP op, no divide, no inf for very negative logits.
    out_ref[...] = (0.5 * (jnp.tanh(0.5 * logits_t) + 1.0)).astype(out_ref.dtype)


@jax.jit
def discriminator_forward(x, params):
    """x: (B, D) float32. params: w1,b1,w2,b2,w3,b3 (weights laid out as (in, out))."""
    B, D = x.shape
    w1, b1 = params["w1"], params["b1"]
    w2, b2 = params["w2"], params["b2"]
    w3, b3 = params["w3"], params["b3"]
    hidden = w1.shape[1]
    w3t = w3.reshape(1, hidden)           # tiny constant; lets layer 3 emit (1, tile_b)
    w_bytes = sum(int(p.size) * p.dtype.itemsize for p in params.values())

    tile_b, num_steps = _choose_tile(B, D, hidden, w_bytes)
    b_pad = tile_b * num_steps
    if b_pad != B:
        x = jnp.pad(x, ((0, b_pad - B), (0, 0)))

    vmem_limit = int(tile_b * _per_row_vmem_bytes(D, hidden)   # streamed tiles + acts
                     + 2 * w_bytes                              # resident weights
                     + (4 << 20))                               # scratch / headroom
    vmem_limit = min(vmem_limit, 64 << 20)                      # portable to v7x VMEM

    cost = pl.CostEstimate(
        flops=2 * b_pad * (D * hidden + hidden * hidden + hidden),
        transcendentals=b_pad * (2 * hidden + 1),
        bytes_accessed=b_pad * D * x.dtype.itemsize + b_pad * 4 + w_bytes,
    )

    const = lambda i: (0, 0)
    out = pl.pallas_call(
        _discriminator_kernel,
        out_shape=jax.ShapeDtypeStruct((1, b_pad), jnp.float32),
        grid=(num_steps,),
        in_specs=[
            pl.BlockSpec((tile_b, D), lambda i: (i, 0)),   # x: streamed per tile
            pl.BlockSpec((D, hidden), const),              # w1: VMEM-resident
            pl.BlockSpec((1, hidden), const),              # b1
            pl.BlockSpec((hidden, hidden), const),         # w2
            pl.BlockSpec((1, hidden), const),               # b2
            pl.BlockSpec((1, hidden), const),               # w3^T
            pl.BlockSpec((1, 1), const),                    # b3
        ],
        out_specs=pl.BlockSpec((1, tile_b), lambda i: (0, i)),   # lane-dense slab
        compiler_params=pltpu.CompilerParams(
            dimension_semantics=("parallel",),
            vmem_limit_bytes=vmem_limit,
        ),
        cost_estimate=cost,
    )(x, w1, b1, w2, b2, w3t, b3)

    return out.reshape(b_pad, 1)[:B]


def init_params(key, input_size, hidden=HIDDEN):
    """Deterministic init mimicking PyTorch Linear default (U[-1/sqrt(fan_in), +])."""
    ks = jax.random.split(key, 6)

    def lin(kw, kb, fan_in, fan_out):
        bound = 1.0 / jnp.sqrt(jnp.float32(fan_in))
        w = jax.random.uniform(kw, (fan_in, fan_out), jnp.float32, -bound, bound)
        b = jax.random.uniform(kb, (1, fan_out), jnp.float32, -bound, bound)
        return w, b

    w1, b1 = lin(ks[0], ks[1], input_size, hidden)
    w2, b2 = lin(ks[2], ks[3], hidden, hidden)
    w3, b3 = lin(ks[4], ks[5], hidden, 1)
    return {"w1": w1, "b1": b1, "w2": w2, "b2": b2, "w3": w3, "b3": b3}


if __name__ == "__main__":
    key = jax.random.PRNGKey(0)
    k_x, k_p = jax.random.split(key)

    batch = 8
    input_size = 32
    x = jax.random.normal(k_x, (batch, input_size), dtype=jnp.float32)
    params = init_params(k_p, input_size)

    out = jax.block_until_ready(discriminator_forward(x, params))
    assert out.shape == (batch, 1)
    assert bool(jnp.all(jnp.isfinite(out)))

    # f32 reference (PyTorch semantics); 'highest' forces true-f32 matmuls in the
    # eager reference.  The kernel path is f32 end-to-end; loose bound only guards
    # against platform-default matmul precision differences.
    h = jnp.tanh(jnp.dot(x, params["w1"], precision="highest") + params["b1"])
    h = jnp.tanh(jnp.dot(h, params["w2"], precision="highest") + params["b2"])
    ref = jax.nn.sigmoid(jnp.dot(h, params["w3"], precision="highest") + params["b3"])
    assert jnp.allclose(out, ref, atol=1e-2, rtol=1e-2)

    print("KERNEL_OK")
</pallas_src>

<mosaic_0001>
module attributes {stable_mosaic.version = 11 : i64} {
  func.func @_discriminator_kernel(%arg0: i32, %arg1: memref<128x32xf32, #tpu.memory_space<vmem>>, %arg2: memref<32x50xf32, #tpu.memory_space<vmem>>, %arg3: memref<1x50xf32, #tpu.memory_space<vmem>>, %arg4: memref<50x50xf32, #tpu.memory_space<vmem>>, %arg5: memref<1x50xf32, #tpu.memory_space<vmem>>, %arg6: memref<1x50xf32, #tpu.memory_space<vmem>>, %arg7: memref<1x1xf32, #tpu.memory_space<vmem>>, %arg8: memref<1x128xf32, #tpu.memory_space<vmem>>) attributes {dimension_semantics = [#tpu.dimension_semantics<parallel>], iteration_bounds = array<i64: 1>, scalar_prefetch = 0 : i64, scratch_operands = 0 : i64, tpu.core_type = #tpu.core_type<tc>, window_params = [{transform_indices = @transform_0, window_bounds = array<i64: 128, 32>}, {pipeline_mode = #tpu.pipeline_mode<synchronous>, transform_indices = @transform_1, window_bounds = array<i64: 32, 50>}, {pipeline_mode = #tpu.pipeline_mode<synchronous>, transform_indices = @transform_2, window_bounds = array<i64: 1, 50>}, {pipeline_mode = #tpu.pipeline_mode<synchronous>, transform_indices = @transform_3, window_bounds = array<i64: 50, 50>}, {pipeline_mode = #tpu.pipeline_mode<synchronous>, transform_indices = @transform_4, window_bounds = array<i64: 1, 50>}, {pipeline_mode = #tpu.pipeline_mode<synchronous>, transform_indices = @transform_5, window_bounds = array<i64: 1, 50>}, {pipeline_mode = #tpu.pipeline_mode<synchronous>, transform_indices = @transform_6, window_bounds = array<i64: 1, 1>}, {transform_indices = @transform_7, window_bounds = array<i64: 1, 128>}]} {
    %c0 = arith.constant 0 : index
    %c0_0 = arith.constant 0 : index
    %0 = vector.load %arg1[%c0, %c0_0] : memref<128x32xf32, #tpu.memory_space<vmem>>, vector<128x32xf32>
    %c0_1 = arith.constant 0 : index
    %c0_2 = arith.constant 0 : index
    %1 = vector.load %arg2[%c0_1, %c0_2] : memref<32x50xf32, #tpu.memory_space<vmem>>, vector<32x50xf32>
    %cst = arith.constant dense<0.000000e+00> : vector<128x50xf32>
    %2 = tpu.matmul %0, %1, %cst {dimension_numbers = #tpu.dot_dimension_numbers<[1], [0], [0], [1], [0, 0, 1, 1], [], []>} : vector<128x32xf32>, vector<32x50xf32>, vector<128x50xf32> -> vector<128x50xf32>
    %c0_3 = arith.constant 0 : index
    %c0_4 = arith.constant 0 : index
    %3 = vector.load %arg3[%c0_3, %c0_4] : memref<1x50xf32, #tpu.memory_space<vmem>>, vector<1x50xf32>
    %4 = vector.broadcast %3 : vector<1x50xf32> to vector<128x50xf32>
    %5 = arith.addf %2, %4 : vector<128x50xf32>
    %6 = math.tanh %5 : vector<128x50xf32>
    %c0_5 = arith.constant 0 : index
    %c0_6 = arith.constant 0 : index
    %7 = vector.load %arg4[%c0_5, %c0_6] : memref<50x50xf32, #tpu.memory_space<vmem>>, vector<50x50xf32>
    %cst_7 = arith.constant dense<0.000000e+00> : vector<128x50xf32>
    %8 = tpu.matmul %6, %7, %cst_7 {dimension_numbers = #tpu.dot_dimension_numbers<[1], [0], [0], [1], [0, 0, 1, 1], [], []>} : vector<128x50xf32>, vector<50x50xf32>, vector<128x50xf32> -> vector<128x50xf32>
    %c0_8 = arith.constant 0 : index
    %c0_9 = arith.constant 0 : index
    %9 = vector.load %arg5[%c0_8, %c0_9] : memref<1x50xf32, #tpu.memory_space<vmem>>, vector<1x50xf32>
    %10 = vector.broadcast %9 : vector<1x50xf32> to vector<128x50xf32>
    %11 = arith.addf %8, %10 : vector<128x50xf32>
    %12 = math.tanh %11 : vector<128x50xf32>
    %c0_10 = arith.constant 0 : index
    %c0_11 = arith.constant 0 : index
    %13 = vector.load %arg6[%c0_10, %c0_11] : memref<1x50xf32, #tpu.memory_space<vmem>>, vector<1x50xf32>
    %cst_12 = arith.constant dense<0.000000e+00> : vector<1x128xf32>
    %14 = tpu.matmul %13, %12, %cst_12 {dimension_numbers = #tpu.dot_dimension_numbers<[1], [1], [0], [0], [0, 0, 1, 0], [], []>} : vector<1x50xf32>, vector<128x50xf32>, vector<1x128xf32> -> vector<1x128xf32>
    %c0_13 = arith.constant 0 : index
    %c0_14 = arith.constant 0 : index
    %15 = vector.load %arg7[%c0_13, %c0_14] : memref<1x1xf32, #tpu.memory_space<vmem>>, vector<1x1xf32>
    %16 = vector.broadcast %15 : vector<1x1xf32> to vector<1x128xf32>
    %17 = arith.addf %14, %16 : vector<1x128xf32>
    %cst_15 = arith.constant 5.000000e-01 : f32
    %18 = vector.broadcast %cst_15 : f32 to vector<1x128xf32>
    %19 = arith.mulf %18, %17 : vector<1x128xf32>
    %20 = math.tanh %19 : vector<1x128xf32>
    %cst_16 = arith.constant 1.000000e+00 : f32
    %21 = vector.broadcast %cst_16 : f32 to vector<1x128xf32>
    %22 = arith.addf %20, %21 : vector<1x128xf32>
    %cst_17 = arith.constant 5.000000e-01 : f32
    %23 = vector.broadcast %cst_17 : f32 to vector<1x128xf32>
    %24 = arith.mulf %23, %22 : vector<1x128xf32>
    %c0_18 = arith.constant 0 : index
    %c0_19 = arith.constant 0 : index
    %25 = vector.load %arg8[%c0_18, %c0_19] : memref<1x128xf32, #tpu.memory_space<vmem>>, vector<1x128xf32>
    tpu.vector_store %arg8[%c0_18, %c0_19], %24 {strides = array<i32>} : memref<1x128xf32, #tpu.memory_space<vmem>>, vector<1x128xf32>,
    return
  }
  func.func @transform_0(%arg0: i32) -> (i32, i32) {
    %c0_i32 = arith.constant 0 : i32
    %c0_i32_0 = arith.constant 0 : i32
    return %arg0, %c0_i32 : i32, i32
  }
  func.func @transform_1(%arg0: i32) -> (i32, i32) {
    %c0_i32 = arith.constant 0 : i32
    %c0_i32_0 = arith.constant 0 : i32
    %c0_i32_1 = arith.constant 0 : i32
    return %c0_i32, %c0_i32_0 : i32, i32
  }
  func.func @transform_2(%arg0: i32) -> (i32, i32) {
    %c0_i32 = arith.constant 0 : i32
    %c0_i32_0 = arith.constant 0 : i32
    %c0_i32_1 = arith.constant 0 : i32
    return %c0_i32, %c0_i32_0 : i32, i32
  }
  func.func @transform_3(%arg0: i32) -> (i32, i32) {
    %c0_i32 = arith.constant 0 : i32
    %c0_i32_0 = arith.constant 0 : i32
    %c0_i32_1 = arith.constant 0 : i32
    return %c0_i32, %c0_i32_0 : i32, i32
  }
  func.func @transform_4(%arg0: i32) -> (i32, i32) {
    %c0_i32 = arith.constant 0 : i32
    %c0_i32_0 = arith.constant 0 : i32
    %c0_i32_1 = arith.constant 0 : i32
    return %c0_i32, %c0_i32_0 : i32, i32
  }
  func.func @transform_5(%arg0: i32) -> (i32, i32) {
    %c0_i32 = arith.constant 0 : i32
    %c0_i32_0 = arith.constant 0 : i32
    %c0_i32_1 = arith.constant 0 : i32
    return %c0_i32, %c0_i32_0 : i32, i32
  }
  func.func @transform_6(%arg0: i32) -> (i32, i32) {
    %c0_i32 = arith.constant 0 : i32
    %c0_i32_0 = arith.constant 0 : i32
    %c0_i32_1 = arith.constant 0 : i32
    return %c0_i32, %c0_i32_0 : i32, i32
  }
  func.func @transform_7(%arg0: i32) -> (i32, i32) {
    %c0_i32 = arith.constant 0 : i32
    %c0_i32_0 = arith.constant 0 : i32
    return %c0_i32, %arg0 : i32, i32
  }
}

</mosaic_0001>

<llo_original>
// kernel: discriminator_forward.1
$region0: #{discriminator_forward.1}
  #allocation0 [shape = 'u32[]', space=smem, size = 0x4, offset = 0x4, fixed_abs, tag = 'smem constant byte address 0x4 - core index']
  #allocation1 [shape = 'u32[144,128]{1,0:T(1,128)}', space=vmem, size = 0x12000, scoped, tag = 'internal scratch']
  #allocation2 [shape = 'f32[1,1]{1,0:T(1,128)S(1)}', space=vmem, size = 0x200, scoped, tag = 'scoped memory for discriminator_forward.1']
  %s0 = inlined_call_operand.vmem [shape: f32[128,32], index: 0, kind: input, shape index: {}]
  %s1 = inlined_call_operand.vmem [shape: f32[32,50], index: 1, kind: input, shape index: {}]
  %s2 = inlined_call_operand.vmem [shape: f32[1,50], index: 2, kind: input, shape index: {}]
  %s3 = inlined_call_operand.vmem [shape: f32[50,50], index: 3, kind: input, shape index: {}]
  %s4 = inlined_call_operand.vmem [shape: f32[1,50], index: 4, kind: input, shape index: {}]
  %s5 = inlined_call_operand.vmem [shape: f32[1,50], index: 5, kind: input, shape index: {}]
  %s6 = inlined_call_operand.<no memory space> [shape: f32[1,1], index: 6, kind: input, shape index: {}]
  %s7 = inlined_call_operand.vmem [shape: f32[1,128], index: 7, kind: output, shape index: {}]
  %s8 = sld [smem:[#allocation0]]
  $region38: #{discriminator_forward.1} parent=0
    _
  %s10 = ssub.s32 1, %s8
  %s11 = scalar_select 0, %s10, %s8
  %v12 = vstv %s6
  %13 = vst [vmem:[#allocation2] sm:$0x1] %v12
  // Predicated region
  $region2: #{discriminator_forward.1} parent=0 // pred_check
    _
  $region3: #{discriminator_forward.1} parent=0 // pred_check_branch
    %15 = sbr.rel (0) target = $region5
  $region4: #{discriminator_forward.1} parent=0 // pred_region
    _
  $region5: #{discriminator_forward.1} parent=0 // pred_fallthru
    _
  // Predicated region
  $region6: #{discriminator_forward.1} parent=0 // pred_check
    _
  $region7: #{discriminator_forward.1} parent=0 // pred_check_branch
    %17 = sbr.rel (0) target = $region9
  $region8: #{discriminator_forward.1} parent=0 // pred_region
    _
  $region9: #{discriminator_forward.1} parent=0 // pred_fallthru
    _
  // Predicated region
  $region10: #{discriminator_forward.1} parent=0 // pred_check
    _
  $region11: #{discriminator_forward.1} parent=0 // pred_check_branch
    %19 = sbr.rel (0) target = $region13
  $region12: #{discriminator_forward.1} parent=0 // pred_region
    _
  $region13: #{discriminator_forward.1} parent=0 // pred_fallthru
    _
  // Predicated region
  $region14: #{discriminator_forward.1} parent=0 // pred_check
    _
  $region15: #{discriminator_forward.1} parent=0 // pred_check_branch
    %21 = sbr.rel (0) target = $region17
  $region16: #{discriminator_forward.1} parent=0 // pred_region
    _
  $region17: #{discriminator_forward.1} parent=0 // pred_fallthru
    _
  // Predicated region
  $region18: #{discriminator_forward.1} parent=0 // pred_check
    _
  $region19: #{discriminator_forward.1} parent=0 // pred_check_branch
    %23 = sbr.rel (0) target = $region21
  $region20: #{discriminator_forward.1} parent=0 // pred_region
    _
  $region21: #{discriminator_forward.1} parent=0 // pred_fallthru
    _
  // Predicated region
  $region22: #{discriminator_forward.1} parent=0 // pred_check
    _
  $region23: #{discriminator_forward.1} parent=0 // pred_check_branch
    %25 = sbr.rel (0) target = $region25
  $region24: #{discriminator_forward.1} parent=0 // pred_region
    _
  $region25: #{discriminator_forward.1} parent=0 // pred_fallthru
    _
  // Predicated region
  $region26: #{discriminator_forward.1} parent=0 // pred_check
    _
  $region27: #{discriminator_forward.1} parent=0 // pred_check_branch
    %27 = sbr.rel (0) target = $region29
  $region28: #{discriminator_forward.1} parent=0 // pred_region
    _
  $region29: #{discriminator_forward.1} parent=0 // pred_fallthru
    _
  %v28 = vld [vmem:[%s0] sm:$0xff]
  %v29 = vld [vmem:[%s0 + $0x8] sm:$0xff]
  %v30 = vld [vmem:[%s0 + $0x10] sm:$0xff]
  %v31 = vld [vmem:[%s0 + $0x18] sm:$0xff]
  %v32 = vld [vmem:[%s0 + $0x20] sm:$0xff]
  %v33 = vld [vmem:[%s0 + $0x28] sm:$0xff]
  %v34 = vld [vmem:[%s0 + $0x30] sm:$0xff]
  %v35 = vld [vmem:[%s0 + $0x38] sm:$0xff]
  %v36 = vld [vmem:[%s0 + $0x40] sm:$0xff]
  %v37 = vld [vmem:[%s0 + $0x48] sm:$0xff]
  %v38 = vld [vmem:[%s0 + $0x50] sm:$0xff]
  %v39 = vld [vmem:[%s0 + $0x58] sm:$0xff]
  %v40 = vld [vmem:[%s0 + $0x60] sm:$0xff]
  %v41 = vld [vmem:[%s0 + $0x68] sm:$0xff]
  %v42 = vld [vmem:[%s0 + $0x70] sm:$0xff]
  %v43 = vld [vmem:[%s0 + $0x78] sm:$0xff]
  %v44 = vld [vmem:[%s1] sm:$0xff]
  %v45 = vld [vmem:[%s1 + $0x8] sm:$0xff]
  %v46 = vld [vmem:[%s1 + $0x10] sm:$0xff]
  %v47 = vld [vmem:[%s1 + $0x18] sm:$0xff]
  %v48 = vld [vmem:[%s2] sm:$0x1]
  %v50 = vlaneseq
  %v51 = vshrl.u32 %v50, 7
  %v52 = vsub.s32 0, %v51
  %v53 = vrot.slane %v48, %v52
  %vm55 = vcmask 261120
  %v57 = vsel %vm55, %v28, 0
  %v60 = vsel %vm55, %v29, 0
  %v63 = vsel %vm55, %v30, 0
  %v66 = vsel %vm55, %v31, 0
  %v69 = vsel %vm55, %v32, 0
  %v72 = vsel %vm55, %v33, 0
  %v75 = vsel %vm55, %v34, 0
  %v78 = vsel %vm55, %v35, 0
  %v81 = vsel %vm55, %v36, 0
  %v84 = vsel %vm55, %v37, 0
  %v87 = vsel %vm55, %v38, 0
  %v90 = vsel %vm55, %v39, 0
  %v93 = vsel %vm55, %v40, 0
  %v96 = vsel %vm55, %v41, 0
  %v99 = vsel %vm55, %v42, 0
  %v102 = vsel %vm55, %v43, 0
  %104 = vmatprep.subr.mxu0 0.0
  %105 = vmatpush1.msra.mxu0 %v44
  %106 = vmatprep.subr.mxu0 0.0
  %107 = vmatpush1.msra.mxu0 %v45
  %108 = vmatprep.subr.mxu0 0.0
  %109 = vmatpush1.msra.mxu0 %v46
  %110 = vmatprep.subr.mxu0 0.0
  %111 = vmatpush1.msra.mxu0 %v47
  %112 = vmatprep.subr.mxu0 0.0
  %113 = vmatpush1.msra.mxu0 0.0
  %114 = vmatprep.subr.mxu0 0.0
  %115 = vmatpush1.msra.mxu0 0.0
  %116 = vmatprep.subr.mxu0 0.0
  %117 = vmatpush1.msra.mxu0 0.0
  %118 = vmatprep.subr.mxu0 0.0
  %119 = vmatpush1.msra.mxu0 0.0
  %120 = vmatprep.subr.mxu0 0.0
  %121 = vmatpush1.msra.mxu0 0.0
  %122 = vmatprep.subr.mxu0 0.0
  %123 = vmatpush1.msra.mxu0 0.0
  %124 = vmatprep.subr.mxu0 0.0
  %125 = vmatpush1.msra.mxu0 0.0
  %126 = vmatprep.subr.mxu0 0.0
  %127 = vmatpush1.msra.mxu0 0.0
  %128 = vmatprep.subr.mxu0 0.0
  %129 = vmatpush1.msra.mxu0 0.0
  %130 = vmatprep.subr.mxu0 0.0
  %131 = vmatpush1.msra.mxu0 0.0
  %132 = vmatprep.subr.mxu0 0.0
  %133 = vmatpush1.msra.mxu0 0.0
  %134 = vmatprep.subr.mxu0 0.0
  %135 = vmatpush1.msra.mxu0 0.0
  %136 = vmatprep.subr.mxu0 0.0
  %137 = vmatpush1.msra.mxu0 0.0
  %138 = vmatprep.subr.mxu0 0.0
  %139 = vmatpush1.msra.mxu0 0.0
  %140 = vmatprep.subr.mxu0 0.0
  %141 = vmatpush1.msra.mxu0 0.0
  %142 = vmatprep.subr.mxu0 0.0
  %143 = vmatpush1.msra.mxu0 0.0
  %144 = vmatprep.subr.mxu0 0.0
  %145 = vmatpush1.msra.mxu0 0.0
  %146 = vmatprep.subr.mxu0 0.0
  %147 = vmatpush1.msra.mxu0 0.0
  %148 = vmatprep.subr.mxu0 0.0
  %149 = vmatpush1.msra.mxu0 0.0
  %150 = vmatprep.subr.mxu0 0.0
  %151 = vmatpush1.msra.mxu0 0.0
  %152 = vmatprep.subr.mxu0 0.0
  %153 = vmatpush1.msra.mxu0 0.0
  %154 = vmatprep.subr.mxu0 0.0
  %155 = vmatpush1.msra.mxu0 0.0
  %156 = vmatprep.subr.mxu0 0.0
  %157 = vmatpush1.msra.mxu0 0.0
  %158 = vmatprep.subr.mxu0 0.0
  %159 = vmatpush1.msra.mxu0 0.0
  %160 = vmatprep.subr.mxu0 0.0
  %161 = vmatpush1.msra.mxu0 0.0
  %162 = vmatprep.subr.mxu0 0.0
  %163 = vmatpush1.msra.mxu0 0.0
  %164 = vmatprep.subr.mxu0 0.0
  %165 = vmatpush1.msra.mxu0 0.0
  %166 = vmatprep.subr.mxu0 0.0
  %167 = vmatpush1.msra.mxu0 0.0
  %168 = vmatprep.mubr.f32.mxu0 0.0
  %169 = vmatmul.mubr.f32.gmra.mrb[0].mxu0 %v57
  %v170 = vpop.f32.mrb[0].mxu0
  %v171 = vadd.f32 %v53, %v170
  %v172 = vpop.f32.mrb[0].mxu0
  %173 = vmatprep.mubr.f32.mxu0 0.0
  %174 = vmatmul.mubr.f32.gmra.mrb[0].mxu0 %v60
  %v175 = vpop.f32.mrb[0].mxu0
  %v176 = vadd.f32 %v53, %v175
  %v177 = vpop.f32.mrb[0].mxu0
  %178 = vmatprep.mubr.f32.mxu0 0.0
  %179 = vmatmul.mubr.f32.gmra.mrb[0].mxu0 %v63
  %v180 = vpop.f32.mrb[0].mxu0
  %v181 = vadd.f32 %v53, %v180
  %v182 = vpop.f32.mrb[0].mxu0
  %183 = vmatprep.mubr.f32.mxu0 0.0
  %184 = vmatmul.mubr.f32.gmra.mrb[0].mxu0 %v66
  %v185 = vpop.f32.mrb[0].mxu0
  %v186 = vadd.f32 %v53, %v185
  %v187 = vpop.f32.mrb[0].mxu0
  %188 = vmatprep.mubr.f32.mxu0 0.0
  %189 = vmatmul.mubr.f32.gmra.mrb[0].mxu0 %v69
  %v190 = vpop.f32.mrb[0].mxu0
  %v191 = vadd.f32 %v53, %v190
  %v192 = vpop.f32.mrb[0].mxu0
  %193 = vmatprep.mubr.f32.mxu0 0.0
  %194 = vmatmul.mubr.f32.gmra.mrb[0].mxu0 %v72
  %v195 = vpop.f32.mrb[0].mxu0
  %v196 = vadd.f32 %v53, %v195
  %v197 = vpop.f32.mrb[0].mxu0
  %198 = vmatprep.mubr.f32.mxu0 0.0
  %199 = vmatmul.mubr.f32.gmra.mrb[0].mxu0 %v75
  %v200 = vpop.f32.mrb[0].mxu0
  %v201 = vadd.f32 %v53, %v200
  %v202 = vpop.f32.mrb[0].mxu0
  %203 = vmatprep.mubr.f32.mxu0 0.0
  %204 = vmatmul.mubr.f32.gmra.mrb[0].mxu0 %v78
  %v205 = vpop.f32.mrb[0].mxu0
  %v206 = vadd.f32 %v53, %v205
  %v207 = vpop.f32.mrb[0].mxu0
  %208 = vmatprep.mubr.f32.mxu0 0.0
  %209 = vmatmul.mubr.f32.gmra.mrb[0].mxu0 %v81
  %v210 = vpop.f32.mrb[0].mxu0
  %v211 = vadd.f32 %v53, %v210
  %v212 = vpop.f32.mrb[0].mxu0
  %213 = vmatprep.mubr.f32.mxu0 0.0
  %214 = vmatmul.mubr.f32.gmra.mrb[0].mxu0 %v84
  %v215 = vpop.f32.mrb[0].mxu0
  %v216 = vadd.f32 %v53, %v215
  %v217 = vpop.f32.mrb[0].mxu0
  %218 = vmatprep.mubr.f32.mxu0 0.0
  %219 = vmatmul.mubr.f32.gmra.mrb[0].mxu0 %v87
  %v220 = vpop.f32.mrb[0].mxu0
  %v221 = vadd.f32 %v53, %v220
  %v222 = vpop.f32.mrb[0].mxu0
  %223 = vmatprep.mubr.f32.mxu0 0.0
  %224 = vmatmul.mubr.f32.gmra.mrb[0].mxu0 %v90
  %v225 = vpop.f32.mrb[0].mxu0
  %v226 = vadd.f32 %v53, %v225
  %v227 = vpop.f32.mrb[0].mxu0
  %228 = vmatprep.mubr.f32.mxu0 0.0
  %229 = vmatmul.mubr.f32.gmra.mrb[0].mxu0 %v93
  %v230 = vpop.f32.mrb[0].mxu0
  %v231 = vadd.f32 %v53, %v230
  %v232 = vpop.f32.mrb[0].mxu0
  %233 = vmatprep.mubr.f32.mxu0 0.0
  %234 = vmatmul.mubr.f32.gmra.mrb[0].mxu0 %v96
  %v235 = vpop.f32.mrb[0].mxu0
  %v236 = vadd.f32 %v53, %v235
  %v237 = vpop.f32.mrb[0].mxu0
  %238 = vmatprep.mubr.f32.mxu0 0.0
  %239 = vmatmul.mubr.f32.gmra.mrb[0].mxu0 %v99
  %v240 = vpop.f32.mrb[0].mxu0
  %v241 = vadd.f32 %v53, %v240
  %v242 = vpop.f32.mrb[0].mxu0
  %243 = vmatprep.mubr.f32.mxu0 0.0
  %244 = vmatmul.mubr.f32.gmra.mrb[0].mxu0 %v102
  %v245 = vpop.f32.mrb[0].mxu0
  %v246 = vadd.f32 %v53, %v245
  %v247 = vpop.f32.mrb[0].mxu0
  %248 = vdwg.mxu0
  %v249 = vtanh.pop %v171
  %v250 = vtanh.pop %v176
  %v251 = vtanh.pop %v181
  %v252 = vtanh.pop %v186
  %v253 = vtanh.pop %v191
  %v254 = vtanh.pop %v196
  %v255 = vtanh.pop %v201
  %v256 = vtanh.pop %v206
  %v257 = vtanh.pop %v211
  %v258 = vtanh.pop %v216
  %v259 = vtanh.pop %v221
  %v260 = vtanh.pop %v226
  %v261 = vtanh.pop %v231
  %v262 = vtanh.pop %v236
  %v263 = vtanh.pop %v241
  %v264 = vtanh.pop %v246
  %v265 = vld [vmem:[%s3] sm:$0xff]
  %v266 = vld [vmem:[%s3 + $0x8] sm:$0xff]
  %v267 = vld [vmem:[%s3 + $0x10] sm:$0xff]
  %v268 = vld [vmem:[%s3 + $0x18] sm:$0xff]
  %v269 = vld [vmem:[%s3 + $0x20] sm:$0xff]
  %v270 = vld [vmem:[%s3 + $0x28] sm:$0xff]
  %v271 = vld [vmem:[%s3 + $0x30] sm:$0x3]
  %v272 = vld [vmem:[%s4] sm:$0x1]
  %v274 = vlaneseq
  %v275 = vshrl.u32 %v274, 7
  %v276 = vsub.s32 0, %v275
  %v277 = vrot.slane %v272, %v276
  %vm279 = vcmask 408576
  %v281 = vsel %vm279, %v249, 0
  %v284 = vsel %vm279, %v250, 0
  %v287 = vsel %vm279, %v251, 0
  %v290 = vsel %vm279, %v252, 0
  %v293 = vsel %vm279, %v253, 0
  %v296 = vsel %vm279, %v254, 0
  %v299 = vsel %vm279, %v255, 0
  %v302 = vsel %vm279, %v256, 0
  %v305 = vsel %vm279, %v257, 0
  %v308 = vsel %vm279, %v258, 0
  %v311 = vsel %vm279, %v259, 0
  %v314 = vsel %vm279, %v260, 0
  %v317 = vsel %vm279, %v261, 0
  %v320 = vsel %vm279, %v262, 0
  %v323 = vsel %vm279, %v263, 0
  %v326 = vsel %vm279, %v264, 0
  %vm328 = vcmask 1041408
  %v330 = vsel %vm328, %v271, 0
  %332 = vmatprep.subr.mxu0 0.0
  %333 = vmatpush1.msra.mxu0 %v265
  %334 = vmatprep.subr.mxu0 0.0
  %335 = vmatpush1.msra.mxu0 %v266
  %336 = vmatprep.subr.mxu0 0.0
  %337 = vmatpush1.msra.mxu0 %v267
  %338 = vmatprep.subr.mxu0 0.0
  %339 = vmatpush1.msra.mxu0 %v268
  %340 = vmatprep.subr.mxu0 0.0
  %341 = vmatpush1.msra.mxu0 %v269
  %342 = vmatprep.subr.mxu0 0.0
  %343 = vmatpush1.msra.mxu0 %v270
  %344 = vmatprep.subr.mxu0 0.0
  %345 = vmatpush1.msra.mxu0 %v330
  %346 = vmatprep.subr.mxu0 0.0
  %347 = vmatpush1.msra.mxu0 0.0
  %348 = vmatprep.subr.mxu0 0.0
  %349 = vmatpush1.msra.mxu0 0.0
  %350 = vmatprep.subr.mxu0 0.0
  %351 = vmatpush1.msra.mxu0 0.0
  %352 = vmatprep.subr.mxu0 0.0
  %353 = vmatpush1.msra.mxu0 0.0
  %354 = vmatprep.subr.mxu0 0.0
  %355 = vmatpush1.msra.mxu0 0.0
  %356 = vmatprep.subr.mxu0 0.0
  %357 = vmatpush1.msra.mxu0 0.0
  %358 = vmatprep.subr.mxu0 0.0
  %359 = vmatpush1.msra.mxu0 0.0
  %360 = vmatprep.subr.mxu0 0.0
  %361 = vmatpush1.msra.mxu0 0.0
  %362 = vmatprep.subr.mxu0 0.0
  %363 = vmatpush1.msra.mxu0 0.0
  %364 = vmatprep.subr.mxu0 0.0
  %365 = vmatpush1.msra.mxu0 0.0
  %366 = vmatprep.subr.mxu0 0.0
  %367 = vmatpush1.msra.mxu0 0.0
  %368 = vmatprep.subr.mxu0 0.0
  %369 = vmatpush1.msra.mxu0 0.0
  %370 = vmatprep.subr.mxu0 0.0
  %371 = vmatpush1.msra.mxu0 0.0
  %372 = vmatprep.subr.mxu0 0.0
  %373 = vmatpush1.msra.mxu0 0.0
  %374 = vmatprep.subr.mxu0 0.0
  %375 = vmatpush1.msra.mxu0 0.0
  %376 = vmatprep.subr.mxu0 0.0
  %377 = vmatpush1.msra.mxu0 0.0
  %378 = vmatprep.subr.mxu0 0.0
  %379 = vmatpush1.msra.mxu0 0.0
  %380 = vmatprep.subr.mxu0 0.0
  %381 = vmatpush1.msra.mxu0 0.0
  %382 = vmatprep.subr.mxu0 0.0
  %383 = vmatpush1.msra.mxu0 0.0
  %384 = vmatprep.subr.mxu0 0.0
  %385 = vmatpush1.msra.mxu0 0.0
  %386 = vmatprep.subr.mxu0 0.0
  %387 = vmatpush1.msra.mxu0 0.0
  %388 = vmatprep.subr.mxu0 0.0
  %389 = vmatpush1.msra.mxu0 0.0
  %390 = vmatprep.subr.mxu0 0.0
  %391 = vmatpush1.msra.mxu0 0.0
  %392 = vmatprep.subr.mxu0 0.0
  %393 = vmatpush1.msra.mxu0 0.0
  %394 = vmatprep.subr.mxu0 0.0
  %395 = vmatpush1.msra.mxu0 0.0
  %396 = vmatprep.mubr.f32.mxu0 0.0
  %397 = vmatmul.mubr.f32.gmra.mrb[0].mxu0 %v281
  %v398 = vpop.f32.mrb[0].mxu0
  %v399 = vadd.f32 %v277, %v398
  %v400 = vpop.f32.mrb[0].mxu0
  %401 = vmatprep.mubr.f32.mxu0 0.0
  %402 = vmatmul.mubr.f32.gmra.mrb[0].mxu0 %v284
  %v403 = vpop.f32.mrb[0].mxu0
  %v404 = vadd.f32 %v277, %v403
  %v405 = vpop.f32.mrb[0].mxu0
  %406 = vmatprep.mubr.f32.mxu0 0.0
  %407 = vmatmul.mubr.f32.gmra.mrb[0].mxu0 %v287
  %v408 = vpop.f32.mrb[0].mxu0
  %v409 = vadd.f32 %v277, %v408
  %v410 = vpop.f32.mrb[0].mxu0
  %411 = vmatprep.mubr.f32.mxu0 0.0
  %412 = vmatmul.mubr.f32.gmra.mrb[0].mxu0 %v290
  %v413 = vpop.f32.mrb[0].mxu0
  %v414 = vadd.f32 %v277, %v413
  %v415 = vpop.f32.mrb[0].mxu0
  %416 = vmatprep.mubr.f32.mxu0 0.0
  %417 = vmatmul.mubr.f32.gmra.mrb[0].mxu0 %v293
  %v418 = vpop.f32.mrb[0].mxu0
  %v419 = vadd.f32 %v277, %v418
  %v420 = vpop.f32.mrb[0].mxu0
  %421 = vmatprep.mubr.f32.mxu0 0.0
  %422 = vmatmul.mubr.f32.gmra.mrb[0].mxu0 %v296
  %v423 = vpop.f32.mrb[0].mxu0
  %v424 = vadd.f32 %v277, %v423
  %v425 = vpop.f32.mrb[0].mxu0
  %426 = vmatprep.mubr.f32.mxu0 0.0
  %427 = vmatmul.mubr.f32.gmra.mrb[0].mxu0 %v299
  %v428 = vpop.f32.mrb[0].mxu0
  %v429 = vadd.f32 %v277, %v428
  %v430 = vpop.f32.mrb[0].mxu0
  %431 = vmatprep.mubr.f32.mxu0 0.0
  %432 = vmatmul.mubr.f32.gmra.mrb[0].mxu0 %v302
  %v433 = vpop.f32.mrb[0].mxu0
  %v434 = vadd.f32 %v277, %v433
  %v435 = vpop.f32.mrb[0].mxu0
  %436 = vmatprep.mubr.f32.mxu0 0.0
  %437 = vmatmul.mubr.f32.gmra.mrb[0].mxu0 %v305
  %v438 = vpop.f32.mrb[0].mxu0
  %v439 = vadd.f32 %v277, %v438
  %v440 = vpop.f32.mrb[0].mxu0
  %441 = vmatprep.mubr.f32.mxu0 0.0
  %442 = vmatmul.mubr.f32.gmra.mrb[0].mxu0 %v308
  %v443 = vpop.f32.mrb[0].mxu0
  %v444 = vadd.f32 %v277, %v443
  %v445 = vpop.f32.mrb[0].mxu0
  %446 = vmatprep.mubr.f32.mxu0 0.0
  %447 = vmatmul.mubr.f32.gmra.mrb[0].mxu0 %v311
  %v448 = vpop.f32.mrb[0].mxu0
  %v449 = vadd.f32 %v277, %v448
  %v450 = vpop.f32.mrb[0].mxu0
  %451 = vmatprep.mubr.f32.mxu0 0.0
  %452 = vmatmul.mubr.f32.gmra.mrb[0].mxu0 %v314
  %v453 = vpop.f32.mrb[0].mxu0
  %v454 = vadd.f32 %v277, %v453
  %v455 = vpop.f32.mrb[0].mxu0
  %456 = vmatprep.mubr.f32.mxu0 0.0
  %457 = vmatmul.mubr.f32.gmra.mrb[0].mxu0 %v317
  %v458 = vpop.f32.mrb[0].mxu0
  %v459 = vadd.f32 %v277, %v458
  %v460 = vpop.f32.mrb[0].mxu0
  %461 = vmatprep.mubr.f32.mxu0 0.0
  %462 = vmatmul.mubr.f32.gmra.mrb[0].mxu0 %v320
  %v463 = vpop.f32.mrb[0].mxu0
  %v464 = vadd.f32 %v277, %v463
  %v465 = vpop.f32.mrb[0].mxu0
  %466 = vmatprep.mubr.f32.mxu0 0.0
  %467 = vmatmul.mubr.f32.gmra.mrb[0].mxu0 %v323
  %v468 = vpop.f32.mrb[0].mxu0
  %v469 = vadd.f32 %v277, %v468
  %v470 = vpop.f32.mrb[0].mxu0
  %471 = vmatprep.mubr.f32.mxu0 0.0
  %472 = vmatmul.mubr.f32.gmra.mrb[0].mxu0 %v326
  %v473 = vpop.f32.mrb[0].mxu0
  %v474 = vadd.f32 %v277, %v473
  %v475 = vpop.f32.mrb[0].mxu0
  %476 = vdwg.mxu0
  %v477 = vtanh.pop %v399
  %v478 = vtanh.pop %v404
  %v479 = vtanh.pop %v409
  %v480 = vtanh.pop %v414
  %v481 = vtanh.pop %v419
  %v482 = vtanh.pop %v424
  %v483 = vtanh.pop %v429
  %v484 = vtanh.pop %v434
  %v485 = vtanh.pop %v439
  %v486 = vtanh.pop %v444
  %v487 = vtanh.pop %v449
  %v488 = vtanh.pop %v454
  %v489 = vtanh.pop %v459
  %v490 = vtanh.pop %v464
  %v491 = vtanh.pop %v469
  %v492 = vtanh.pop %v474
  %v493 = vld [vmem:[%s5] sm:$0x1]
  %v494 = vld [vmem:[#allocation2] sm:$0x1]
  %496 = vset.pattern.permute.xlu0 0
  %497 = vperm.xlu0 %496, %v494
  %v498 = vpop.permute.xlu0 %497
  %v500 = vlaneseq
  %v501 = vshrl.u32 %v500, 7
  %v502 = vsub.s32 0, %v501
  %v503 = vrot.slane %v498, %v502
  %v505 = vsel %vm279, %v493, 0
  %v508 = vsel %vm279, %v477, 0
  %v511 = vsel %vm279, %v478, 0
  %v514 = vsel %vm279, %v479, 0
  %v517 = vsel %vm279, %v480, 0
  %v520 = vsel %vm279, %v481, 0
  %v523 = vsel %vm279, %v482, 0
  %v526 = vsel %vm279, %v483, 0
  %v529 = vsel %vm279, %v484, 0
  %v532 = vsel %vm279, %v485, 0
  %v535 = vsel %vm279, %v486, 0
  %v538 = vsel %vm279, %v487, 0
  %v541 = vsel %vm279, %v488, 0
  %v544 = vsel %vm279, %v489, 0
  %v547 = vsel %vm279, %v490, 0
  %v550 = vsel %vm279, %v491, 0
  %v553 = vsel %vm279, %v492, 0
  %555 = vmatprep.subr.mxu0 0.0
  %556 = vmatpush1.xpose.msra.mxu0 %v508
  %557 = vmatprep.subr.mxu0 0.0
  %558 = vmatpush1.xpose.msra.mxu0 %v511
  %559 = vmatprep.subr.mxu0 0.0
  %560 = vmatpush1.xpose.msra.mxu0 %v514
  %561 = vmatprep.subr.mxu0 0.0
  %562 = vmatpush1.xpose.msra.mxu0 %v517
  %563 = vmatprep.subr.mxu0 0.0
  %564 = vmatpush1.xpose.msra.mxu0 %v520
  %565 = vmatprep.subr.mxu0 0.0
  %566 = vmatpush1.xpose.msra.mxu0 %v523
  %567 = vmatprep.subr.mxu0 0.0
  %568 = vmatpush1.xpose.msra.mxu0 %v526
  %569 = vmatprep.subr.mxu0 0.0
  %570 = vmatpush1.xpose.msra.mxu0 %v529
  %571 = vmatprep.subr.mxu0 0.0
  %572 = vmatpush1.xpose.msra.mxu0 %v532
  %573 = vmatprep.subr.mxu0 0.0
  %574 = vmatpush1.xpose.msra.mxu0 %v535
  %575 = vmatprep.subr.mxu0 0.0
  %576 = vmatpush1.xpose.msra.mxu0 %v538
  %577 = vmatprep.subr.mxu0 0.0
  %578 = vmatpush1.xpose.msra.mxu0 %v541
  %579 = vmatprep.subr.mxu0 0.0
  %580 = vmatpush1.xpose.msra.mxu0 %v544
  %581 = vmatprep.subr.mxu0 0.0
  %582 = vmatpush1.xpose.msra.mxu0 %v547
  %583 = vmatprep.subr.mxu0 0.0
  %584 = vmatpush1.xpose.msra.mxu0 %v550
  %585 = vmatprep.subr.mxu0 0.0
  %586 = vmatpush1.xpose.msra.mxu0 %v553
  %587 = vmatprep.subr.mxu0 0.0
  %588 = vmatpush1.xpose.msra.mxu0 0.0
  %589 = vmatprep.subr.mxu0 0.0
  %590 = vmatpush1.xpose.msra.mxu0 0.0
  %591 = vmatprep.subr.mxu0 0.0
  %592 = vmatpush1.xpose.msra.mxu0 0.0
  %593 = vmatprep.subr.mxu0 0.0
  %594 = vmatpush1.xpose.msra.mxu0 0.0
  %595 = vmatprep.subr.mxu0 0.0
  %596 = vmatpush1.xpose.msra.mxu0 0.0
  %597 = vmatprep.subr.mxu0 0.0
  %598 = vmatpush1.xpose.msra.mxu0 0.0
  %599 = vmatprep.subr.mxu0 0.0
  %600 = vmatpush1.xpose.msra.mxu0 0.0
  %601 = vmatprep.subr.mxu0 0.0
  %602 = vmatpush1.xpose.msra.mxu0 0.0
  %603 = vmatprep.subr.mxu0 0.0
  %604 = vmatpush1.xpose.msra.mxu0 0.0
  %605 = vmatprep.subr.mxu0 0.0
  %606 = vmatpush1.xpose.msra.mxu0 0.0
  %607 = vmatprep.subr.mxu0 0.0
  %608 = vmatpush1.xpose.msra.mxu0 0.0
  %609 = vmatprep.subr.mxu0 0.0
  %610 = vmatpush1.xpose.msra.mxu0 0.0
  %611 = vmatprep.subr.mxu0 0.0
  %612 = vmatpush1.xpose.msra.mxu0 0.0
  %613 = vmatprep.subr.mxu0 0.0
  %614 = vmatpush1.xpose.msra.mxu0 0.0
  %615 = vmatprep.subr.mxu0 0.0
  %616 = vmatpush1.xpose.msra.mxu0 0.0
  %617 = vmatprep.subr.mxu0 0.0
  %618 = vmatpush1.xpose.msra.mxu0 0.0
  %619 = vmatprep.mubr.f32.mxu0 0.0
  %620 = vmatmul.mubr.f32.gmra.mrb[0].mxu0 %v505
  %v621 = vpop.f32.mrb[0].mxu0
  %v622 = vadd.f32 %v503, %v621
  %v623 = vpop.f32.mrb[0].mxu0
  %624 = vdwg.mxu0
  %v625 = vmul.f32 %v622, 0.5
  %v626 = vtanh.pop %v625
  %v627 = vadd.f32 %v626, 1.0
  %v628 = vmul.f32 %v627, 0.5
  %629 = vst [vmem:[%s7] sm:$0x1] %v628
  // Predicated region
  $region30: #{discriminator_forward.1} parent=0 // pred_check
    _
  $region31: #{discriminator_forward.1} parent=0 // pred_check_branch
    %631 = sbr.rel (0) target = $region33
  $region32: #{discriminator_forward.1} parent=0 // pred_region
    _
  $region33: #{discriminator_forward.1} parent=0 // pred_fallthru
    _
  // Predicated region
  $region34: #{discriminator_forward.1} parent=0 // pred_check
    _
  $region35: #{discriminator_forward.1} parent=0 // pred_check_branch
    %633 = sbr.rel (0) target = $region37
  $region36: #{discriminator_forward.1} parent=0 // pred_region
    _
  $region37: #{discriminator_forward.1} parent=0 // pred_fallthru
    _

</llo_original>
